<compile_context>
chip_gen: v6e
topology: v6e:2x2x1
jax: 0.10.0
libtpu: 0.0.40
codegen_flags: <defaults>
</compile_context>

<pallas_src>
import jax
import jax.numpy as jnp
from jax.experimental import pallas as pl
from jax.experimental.pallas import tpu as pltpu


def mlp_kernel(x_ref, w1_ref, b1_ref, w2_ref, b2_ref, w3_ref, b3_ref, o_ref):
    # x_ref: (13, TB) transposed input tile; weights in PyTorch (out, in) layout.
    # Layer 1: (128,13) @ (13,TB) -> (128,TB)   [MXU] + bias + ReLU [VPU]
    h1 = jnp.dot(w1_ref[...], x_ref[...], preferred_element_type=jnp.float32)
    h1 = jnp.maximum(h1 + b1_ref[...], 0.0)
    # Layer 2: (128,128) @ (128,TB) -> (128,TB)
    h2 = jnp.dot(w2_ref[...], h1, preferred_element_type=jnp.float32)
    h2 = jnp.maximum(h2 + b2_ref[...], 0.0)
    # Layer 3 (128 -> 1): VPU multiply + sublane reduction -> lane-dense (1, TB) row.
    out = jnp.sum(h2 * w3_ref[...], axis=0, keepdims=True) + b3_ref[0]
    o_ref[...] = out.astype(o_ref.dtype)


def _round_up(n, m):
    return (n + m - 1) // m * m


def neural_network_forward(x, params, *, tile_b=2048):
    """x: (B, ...) -> logits (B, 1). Matches PyTorch NeuralNetwork.forward()."""
    w1, b1, w2, b2, w3, b3 = params  # PyTorch layouts: W (out,in), b (out,)
    B = x.shape[0]
    x2d = x.reshape(B, -1).astype(jnp.float32)        # nn.Flatten()
    in_f = x2d.shape[1]

    tb = min(tile_b, _round_up(B, 128))               # lane-dense tile, multiple of 128
    b_pad = _round_up(B, tb)
    if b_pad != B:                                    # pad batch remainder (sliced off later)
        x2d = jnp.pad(x2d, ((0, b_pad - B), (0, 0)))
    xt = x2d.T                                        # (in_f, B_pad): batch on lanes

    b1c = b1.reshape(-1, 1)                           # (128, 1) column biases
    b2c = b2.reshape(-1, 1)
    w3c = w3.reshape(-1, 1)                           # (1,128) -> (128,1) column
    b3s = b3.reshape(-1)                              # (1,) scalar for SMEM

    out_t = pl.pallas_call(
        mlp_kernel,
        out_shape=jax.ShapeDtypeStruct((1, b_pad), jnp.float32),
        grid=(b_pad // tb,),
        in_specs=[
            pl.BlockSpec((in_f, tb), lambda i: (0, i)),        # streamed input tile
            pl.BlockSpec(w1.shape, lambda i: (0, 0)),          # VMEM-resident weights
            pl.BlockSpec(b1c.shape, lambda i: (0, 0)),
            pl.BlockSpec(w2.shape, lambda i: (0, 0)),
            pl.BlockSpec(b2c.shape, lambda i: (0, 0)),
            pl.BlockSpec(w3c.shape, lambda i: (0, 0)),
            pl.BlockSpec(memory_space=pltpu.MemorySpace.SMEM), # b3 scalar in SMEM
        ],
        out_specs=pl.BlockSpec((1, tb), lambda i: (0, i)),     # lane-dense output slab
        compiler_params=pltpu.CompilerParams(
            dimension_semantics=("parallel",),                 # megacore split on v7x
        ),
    )(xt, w1, b1c, w2, b2c, w3c, b3s)

    return out_t[0, :B].reshape(B, 1)


def init_params(key):
    """Deterministic init with PyTorch nn.Linear layouts: W (out,in), b (out,)."""
    def linear(k, fan_in, fan_out):
        kw, kb = jax.random.split(k)
        bound = 1.0 / jnp.sqrt(fan_in)
        w = jax.random.uniform(kw, (fan_out, fan_in), jnp.float32, -bound, bound)
        b = jax.random.uniform(kb, (fan_out,), jnp.float32, -bound, bound)
        return w, b

    k1, k2, k3 = jax.random.split(key, 3)
    w1, b1 = linear(k1, 13, 128)
    w2, b2 = linear(k2, 128, 128)
    w3, b3 = linear(k3, 128, 1)
    return (w1, b1, w2, b2, w3, b3)


if __name__ == "__main__":
    key = jax.random.PRNGKey(0)
    kp, kx = jax.random.split(key)
    params = init_params(kp)

    # Small batch of 13-feature vectors (as the first Linear implies).
    x = jax.random.normal(kx, (8, 13), dtype=jnp.float32)

    logits = neural_network_forward(x, params)
    jax.block_until_ready(logits)

    # Pure-JAX reference of the same PyTorch math: relu(x @ W^T + b) chain.
    w1, b1, w2, b2, w3, b3 = params
    h = jnp.maximum(x @ w1.T + b1, 0.0)
    h = jnp.maximum(h @ w2.T + b2, 0.0)
    ref = h @ w3.T + b3

    assert logits.shape == (8, 1)
    assert jnp.allclose(logits, ref, atol=1e-4, rtol=1e-4)

    print("KERNEL_OK")
</pallas_src>

<mosaic_0001>
module attributes {stable_mosaic.version = 11 : i64} {
  func.func @mlp_kernel(%arg0: i32, %arg1: memref<13x128xf32, #tpu.memory_space<vmem>>, %arg2: memref<128x13xf32, #tpu.memory_space<vmem>>, %arg3: memref<128x1xf32, #tpu.memory_space<vmem>>, %arg4: memref<128x128xf32, #tpu.memory_space<vmem>>, %arg5: memref<128x1xf32, #tpu.memory_space<vmem>>, %arg6: memref<128x1xf32, #tpu.memory_space<vmem>>, %arg7: memref<1xf32, #tpu.memory_space<smem>>, %arg8: memref<1x128xf32, #tpu.memory_space<vmem>>) attributes {dimension_semantics = [#tpu.dimension_semantics<parallel>], iteration_bounds = array<i64: 1>, scalar_prefetch = 0 : i64, scratch_operands = 0 : i64, tpu.core_type = #tpu.core_type<tc>, window_params = [{transform_indices = @transform_0, window_bounds = array<i64: 13, 128>}, {pipeline_mode = #tpu.pipeline_mode<synchronous>, transform_indices = @transform_1, window_bounds = array<i64: 128, 13>}, {pipeline_mode = #tpu.pipeline_mode<synchronous>, transform_indices = @transform_2, window_bounds = array<i64: 128, 1>}, {pipeline_mode = #tpu.pipeline_mode<synchronous>, transform_indices = @transform_3, window_bounds = array<i64: 128, 128>}, {pipeline_mode = #tpu.pipeline_mode<synchronous>, transform_indices = @transform_4, window_bounds = array<i64: 128, 1>}, {pipeline_mode = #tpu.pipeline_mode<synchronous>, transform_indices = @transform_5, window_bounds = array<i64: 128, 1>}, {transform_indices = @transform_6, window_bounds = array<i64: 1>}, {transform_indices = @transform_7, window_bounds = array<i64: 1, 128>}]} {
    %c0 = arith.constant 0 : index
    %c0_0 = arith.constant 0 : index
    %0 = vector.load %arg2[%c0, %c0_0] : memref<128x13xf32, #tpu.memory_space<vmem>>, vector<128x13xf32>
    %c0_1 = arith.constant 0 : index
    %c0_2 = arith.constant 0 : index
    %1 = vector.load %arg1[%c0_1, %c0_2] : memref<13x128xf32, #tpu.memory_space<vmem>>, vector<13x128xf32>
    %cst = arith.constant dense<0.000000e+00> : vector<128x128xf32>
    %2 = tpu.matmul %0, %1, %cst {dimension_numbers = #tpu.dot_dimension_numbers<[1], [0], [0], [1], [0, 0, 1, 1], [], []>} : vector<128x13xf32>, vector<13x128xf32>, vector<128x128xf32> -> vector<128x128xf32>
    %c0_3 = arith.constant 0 : index
    %c0_4 = arith.constant 0 : index
    %3 = vector.load %arg3[%c0_3, %c0_4] : memref<128x1xf32, #tpu.memory_space<vmem>>, vector<128x1xf32>
    %4 = vector.broadcast %3 : vector<128x1xf32> to vector<128x128xf32>
    %5 = arith.addf %2, %4 : vector<128x128xf32>
    %cst_5 = arith.constant 0.000000e+00 : f32
    %6 = vector.broadcast %cst_5 : f32 to vector<128x128xf32>
    %7 = arith.maximumf %5, %6 : vector<128x128xf32>
    %c0_6 = arith.constant 0 : index
    %c0_7 = arith.constant 0 : index
    %8 = vector.load %arg4[%c0_6, %c0_7] : memref<128x128xf32, #tpu.memory_space<vmem>>, vector<128x128xf32>
    %cst_8 = arith.constant dense<0.000000e+00> : vector<128x128xf32>
    %9 = tpu.matmul %8, %7, %cst_8 {dimension_numbers = #tpu.dot_dimension_numbers<[1], [0], [0], [1], [0, 0, 1, 1], [], []>} : vector<128x128xf32>, vector<128x128xf32>, vector<128x128xf32> -> vector<128x128xf32>
    %c0_9 = arith.constant 0 : index
    %c0_10 = arith.constant 0 : index
    %10 = vector.load %arg5[%c0_9, %c0_10] : memref<128x1xf32, #tpu.memory_space<vmem>>, vector<128x1xf32>
    %11 = vector.broadcast %10 : vector<128x1xf32> to vector<128x128xf32>
    %12 = arith.addf %9, %11 : vector<128x128xf32>
    %cst_11 = arith.constant 0.000000e+00 : f32
    %13 = vector.broadcast %cst_11 : f32 to vector<128x128xf32>
    %14 = arith.maximumf %12, %13 : vector<128x128xf32>
    %c0_12 = arith.constant 0 : index
    %c0_13 = arith.constant 0 : index
    %15 = vector.load %arg6[%c0_12, %c0_13] : memref<128x1xf32, #tpu.memory_space<vmem>>, vector<128x1xf32>
    %16 = vector.broadcast %15 : vector<128x1xf32> to vector<128x128xf32>
    %17 = arith.mulf %14, %16 : vector<128x128xf32>
    %cst_14 = arith.constant dense<0.000000e+00> : vector<128xf32>
    %18 = vector.multi_reduction <add>, %17, %cst_14 [0] : vector<128x128xf32> to vector<128xf32>
    %19 = vector.shape_cast %18 : vector<128xf32> to vector<1x128xf32>
    %c0_15 = arith.constant 0 : index
    %20 = memref.load %arg7[%c0_15] : memref<1xf32, #tpu.memory_space<smem>>
    %21 = vector.broadcast %20 : f32 to vector<1x128xf32>
    %22 = arith.addf %19, %21 : vector<1x128xf32>
    %c0_16 = arith.constant 0 : index
    %c0_17 = arith.constant 0 : index
    %23 = vector.load %arg8[%c0_16, %c0_17] : memref<1x128xf32, #tpu.memory_space<vmem>>, vector<1x128xf32>
    tpu.vector_store %arg8[%c0_16, %c0_17], %22 {strides = array<i32>} : memref<1x128xf32, #tpu.memory_space<vmem>>, vector<1x128xf32>,
    return
  }
  func.func @transform_0(%arg0: i32) -> (i32, i32) {
    %c0_i32 = arith.constant 0 : i32
    %c0_i32_0 = arith.constant 0 : i32
    return %c0_i32, %arg0 : i32, i32
  }
  func.func @transform_1(%arg0: i32) -> (i32, i32) {
    %c0_i32 = arith.constant 0 : i32
    %c0_i32_0 = arith.constant 0 : i32
    %c0_i32_1 = arith.constant 0 : i32
    return %c0_i32, %c0_i32_0 : i32, i32
  }
  func.func @transform_2(%arg0: i32) -> (i32, i32) {
    %c0_i32 = arith.constant 0 : i32
    %c0_i32_0 = arith.constant 0 : i32
    %c0_i32_1 = arith.constant 0 : i32
    return %c0_i32, %c0_i32_0 : i32, i32
  }
  func.func @transform_3(%arg0: i32) -> (i32, i32) {
    %c0_i32 = arith.constant 0 : i32
    %c0_i32_0 = arith.constant 0 : i32
    %c0_i32_1 = arith.constant 0 : i32
    return %c0_i32, %c0_i32_0 : i32, i32
  }
  func.func @transform_4(%arg0: i32) -> (i32, i32) {
    %c0_i32 = arith.constant 0 : i32
    %c0_i32_0 = arith.constant 0 : i32
    %c0_i32_1 = arith.constant 0 : i32
    return %c0_i32, %c0_i32_0 : i32, i32
  }
  func.func @transform_5(%arg0: i32) -> (i32, i32) {
    %c0_i32 = arith.constant 0 : i32
    %c0_i32_0 = arith.constant 0 : i32
    %c0_i32_1 = arith.constant 0 : i32
    return %c0_i32, %c0_i32_0 : i32, i32
  }
  func.func @transform_6(%arg0: i32) -> i32 {
    %c0_i32 = arith.constant 0 : i32
    %c0_i32_0 = arith.constant 0 : i32
    return %c0_i32 : i32
  }
  func.func @transform_7(%arg0: i32) -> (i32, i32) {
    %c0_i32 = arith.constant 0 : i32
    %c0_i32_0 = arith.constant 0 : i32
    return %c0_i32, %arg0 : i32, i32
  }
}

</mosaic_0001>

<llo_original>
// kernel: tpu_custom_call.1
$region0: #{tpu_custom_call.1}
  #allocation0 [shape = 'u32[]', space=smem, size = 0x4, offset = 0x4, fixed_abs, tag = 'smem constant byte address 0x4 - core index']
  #allocation1 [shape = 'u32[144,128]{1,0:T(1,128)}', space=vmem, size = 0x12000, scoped, tag = 'internal scratch']
  #allocation2 [shape = 'f32[1]{0:T(128)S(6)}', space=smem, size = 0x200, scoped, tag = 'scoped memory for tpu_custom_call.1']
  %s0 = inlined_call_operand.vmem [shape: f32[13,128], index: 0, kind: input, shape index: {}]
  %s1 = inlined_call_operand.vmem [shape: f32[128,13], index: 1, kind: input, shape index: {}]
  %s2 = inlined_call_operand.vmem [shape: f32[128,1], index: 2, kind: input, shape index: {}]
  %s3 = inlined_call_operand.vmem [shape: f32[128,128], index: 3, kind: input, shape index: {}]
  %s4 = inlined_call_operand.vmem [shape: f32[128,1], index: 4, kind: input, shape index: {}]
  %s5 = inlined_call_operand.vmem [shape: f32[128,1], index: 5, kind: input, shape index: {}]
  %s6 = inlined_call_operand.<no memory space> [shape: f32[1], index: 6, kind: input, shape index: {}]
  %s7 = inlined_call_operand.hbm [shape: f32[1,128], index: 7, kind: output, shape index: {}]
  %s8 = sld [smem:[#allocation0]]
  $region38: #{tpu_custom_call.1} parent=0
    _
  %s10 = ssub.s32 1, %s8
  %s11 = scalar_select 0, %s10, %s8
  %12 = sst [smem:[#allocation2]] %s6
  $region1: #{tpu_custom_call.1} parent=0
    #allocation3 [shape = 'u8[512]{0}', space=vmem, size = 0x400, scoped, tag = 'output window, operand 0, single buffered']
    #allocation4 [shape = 's32[1]{0}', space=sflag, size = 0x4, scoped, tag = 'scoped memory for tpu_custom_call.1']
    %13 = vsyncpa [#allocation4], 0
    // Predicated region
    $region2: #{tpu_custom_call.1} parent=1 // pred_check
      _
    $region3: #{tpu_custom_call.1} parent=1 // pred_check_branch
      %15 = sbr.rel (0) target = $region5
    $region4: #{tpu_custom_call.1} parent=1 // pred_region
      _
    $region5: #{tpu_custom_call.1} parent=1 // pred_fallthru
      _
    // Predicated region
    $region6: #{tpu_custom_call.1} parent=1 // pred_check
      _
    $region7: #{tpu_custom_call.1} parent=1 // pred_check_branch
      %17 = sbr.rel (0) target = $region9
    $region8: #{tpu_custom_call.1} parent=1 // pred_region
      _
    $region9: #{tpu_custom_call.1} parent=1 // pred_fallthru
      _
    // Predicated region
    $region10: #{tpu_custom_call.1} parent=1 // pred_check
      _
    $region11: #{tpu_custom_call.1} parent=1 // pred_check_branch
      %19 = sbr.rel (0) target = $region13
    $region12: #{tpu_custom_call.1} parent=1 // pred_region
      _
    $region13: #{tpu_custom_call.1} parent=1 // pred_fallthru
      _
    // Predicated region
    $region14: #{tpu_custom_call.1} parent=1 // pred_check
      _
    $region15: #{tpu_custom_call.1} parent=1 // pred_check_branch
      %21 = sbr.rel (0) target = $region17
    $region16: #{tpu_custom_call.1} parent=1 // pred_region
      _
    $region17: #{tpu_custom_call.1} parent=1 // pred_fallthru
      _
    // Predicated region
    $region18: #{tpu_custom_call.1} parent=1 // pred_check
      _
    $region19: #{tpu_custom_call.1} parent=1 // pred_check_branch
      %23 = sbr.rel (0) target = $region21
    $region20: #{tpu_custom_call.1} parent=1 // pred_region
      _
    $region21: #{tpu_custom_call.1} parent=1 // pred_fallthru
      _
    // Predicated region
    $region22: #{tpu_custom_call.1} parent=1 // pred_check
      _
    $region23: #{tpu_custom_call.1} parent=1 // pred_check_branch
      %25 = sbr.rel (0) target = $region25
    $region24: #{tpu_custom_call.1} parent=1 // pred_region
      _
    $region25: #{tpu_custom_call.1} parent=1 // pred_fallthru
      _
    // Predicated region
    $region26: #{tpu_custom_call.1} parent=1 // pred_check
      _
    $region27: #{tpu_custom_call.1} parent=1 // pred_check_branch
      %27 = sbr.rel (0) target = $region29
    $region28: #{tpu_custom_call.1} parent=1 // pred_region
      _
    $region29: #{tpu_custom_call.1} parent=1 // pred_fallthru
      _
    %v28 = vld [vmem:[%s1] sm:$0xff]
    %v29 = vld [vmem:[%s1 + $0x8] sm:$0xff]
    %v30 = vld [vmem:[%s1 + $0x10] sm:$0xff]
    %v31 = vld [vmem:[%s1 + $0x18] sm:$0xff]
    %v32 = vld [vmem:[%s1 + $0x20] sm:$0xff]
    %v33 = vld [vmem:[%s1 + $0x28] sm:$0xff]
    %v34 = vld [vmem:[%s1 + $0x30] sm:$0xff]
    %v35 = vld [vmem:[%s1 + $0x38] sm:$0xff]
    %v36 = vld [vmem:[%s1 + $0x40] sm:$0xff]
    %v37 = vld [vmem:[%s1 + $0x48] sm:$0xff]
    %v38 = vld [vmem:[%s1 + $0x50] sm:$0xff]
    %v39 = vld [vmem:[%s1 + $0x58] sm:$0xff]
    %v40 = vld [vmem:[%s1 + $0x60] sm:$0xff]
    %v41 = vld [vmem:[%s1 + $0x68] sm:$0xff]
    %v42 = vld [vmem:[%s1 + $0x70] sm:$0xff]
    %v43 = vld [vmem:[%s1 + $0x78] sm:$0xff]
    %v44 = vld [vmem:[%s0] sm:$0xff]
    %v45 = vld [vmem:[%s0 + $0x8] sm:$0x1f]
    %v46 = vld [vmem:[%s2] sm:$0xff]
    %v47 = vld [vmem:[%s2 + $0x8] sm:$0xff]
    %v48 = vld [vmem:[%s2 + $0x10] sm:$0xff]
    %v49 = vld [vmem:[%s2 + $0x18] sm:$0xff]
    %v50 = vld [vmem:[%s2 + $0x20] sm:$0xff]
    %v51 = vld [vmem:[%s2 + $0x28] sm:$0xff]
    %v52 = vld [vmem:[%s2 + $0x30] sm:$0xff]
    %v53 = vld [vmem:[%s2 + $0x38] sm:$0xff]
    %v54 = vld [vmem:[%s2 + $0x40] sm:$0xff]
    %v55 = vld [vmem:[%s2 + $0x48] sm:$0xff]
    %v56 = vld [vmem:[%s2 + $0x50] sm:$0xff]
    %v57 = vld [vmem:[%s2 + $0x58] sm:$0xff]
    %v58 = vld [vmem:[%s2 + $0x60] sm:$0xff]
    %v59 = vld [vmem:[%s2 + $0x68] sm:$0xff]
    %v60 = vld [vmem:[%s2 + $0x70] sm:$0xff]
    %v61 = vld [vmem:[%s2 + $0x78] sm:$0xff]
    %63 = vset.pattern.permute.xlu0 0
    %64 = vperm.xlu0 %63, %v46
    %v65 = vpop.permute.xlu0 %64
    %68 = vset.pattern.permute.xlu0 0
    %69 = vperm.xlu0 %68, %v47
    %v70 = vpop.permute.xlu0 %69
    %73 = vset.pattern.permute.xlu0 0
    %74 = vperm.xlu0 %73, %v48
    %v75 = vpop.permute.xlu0 %74
    %78 = vset.pattern.permute.xlu0 0
    %79 = vperm.xlu0 %78, %v49
    %v80 = vpop.permute.xlu0 %79
    %83 = vset.pattern.permute.xlu0 0
    %84 = vperm.xlu0 %83, %v50
    %v85 = vpop.permute.xlu0 %84
    %88 = vset.pattern.permute.xlu0 0
    %89 = vperm.xlu0 %88, %v51
    %v90 = vpop.permute.xlu0 %89
    %93 = vset.pattern.permute.xlu0 0
    %94 = vperm.xlu0 %93, %v52
    %v95 = vpop.permute.xlu0 %94
    %98 = vset.pattern.permute.xlu0 0
    %99 = vperm.xlu0 %98, %v53
    %v100 = vpop.permute.xlu0 %99
    %103 = vset.pattern.permute.xlu0 0
    %104 = vperm.xlu0 %103, %v54
    %v105 = vpop.permute.xlu0 %104
    %108 = vset.pattern.permute.xlu0 0
    %109 = vperm.xlu0 %108, %v55
    %v110 = vpop.permute.xlu0 %109
    %113 = vset.pattern.permute.xlu0 0
    %114 = vperm.xlu0 %113, %v56
    %v115 = vpop.permute.xlu0 %114
    %118 = vset.pattern.permute.xlu0 0
    %119 = vperm.xlu0 %118, %v57
    %v120 = vpop.permute.xlu0 %119
    %123 = vset.pattern.permute.xlu0 0
    %124 = vperm.xlu0 %123, %v58
    %v125 = vpop.permute.xlu0 %124
    %128 = vset.pattern.permute.xlu0 0
    %129 = vperm.xlu0 %128, %v59
    %v130 = vpop.permute.xlu0 %129
    %133 = vset.pattern.permute.xlu0 0
    %134 = vperm.xlu0 %133, %v60
    %v135 = vpop.permute.xlu0 %134
    %138 = vset.pattern.permute.xlu0 0
    %139 = vperm.xlu0 %138, %v61
    %v140 = vpop.permute.xlu0 %139
    %vm142 = vcmask 105472
    %v144 = vsel %vm142, %v28, 0
    %v147 = vsel %vm142, %v29, 0
    %v150 = vsel %vm142, %v30, 0
    %v153 = vsel %vm142, %v31, 0
    %v156 = vsel %vm142, %v32, 0
    %v159 = vsel %vm142, %v33, 0
    %v162 = vsel %vm142, %v34, 0
    %v165 = vsel %vm142, %v35, 0
    %v168 = vsel %vm142, %v36, 0
    %v171 = vsel %vm142, %v37, 0
    %v174 = vsel %vm142, %v38, 0
    %v177 = vsel %vm142, %v39, 0
    %v180 = vsel %vm142, %v40, 0
    %v183 = vsel %vm142, %v41, 0
    %v186 = vsel %vm142, %v42, 0
    %v189 = vsel %vm142, %v43, 0
    %vm191 = vcmask 1044480
    %v193 = vsel %vm191, %v45, 0
    %195 = vmatprep.subr.mxu0 0.0
    %196 = vmatpush1.msra.mxu0 0.0
    %197 = vmatprep.subr.mxu0 0.0
    %198 = vmatpush1.msra.mxu0 0.0
    %199 = vmatprep.subr.mxu0 0.0
    %200 = vmatpush1.msra.mxu0 0.0
    %201 = vmatprep.subr.mxu0 0.0
    %202 = vmatpush1.msra.mxu0 0.0
    %203 = vmatprep.subr.mxu0 0.0
    %204 = vmatpush1.msra.mxu0 0.0
    %205 = vmatprep.subr.mxu0 0.0
    %206 = vmatpush1.msra.mxu0 0.0
    %207 = vmatprep.subr.mxu0 0.0
    %208 = vmatpush1.msra.mxu0 0.0
    %209 = vmatprep.subr.mxu0 0.0
    %210 = vmatpush1.msra.mxu0 0.0
    %211 = vmatprep.subr.mxu0 0.0
    %212 = vmatpush1.msra.mxu0 0.0
    %213 = vmatprep.subr.mxu0 0.0
    %214 = vmatpush1.msra.mxu0 0.0
    %215 = vmatprep.subr.mxu0 0.0
    %216 = vmatpush1.msra.mxu0 0.0
    %217 = vmatprep.subr.mxu0 0.0
    %218 = vmatpush1.msra.mxu0 0.0
    %219 = vmatprep.subr.mxu0 0.0
    %220 = vmatpush1.msra.mxu0 0.0
    %221 = vmatprep.subr.mxu0 0.0
    %222 = vmatpush1.msra.mxu0 0.0
    %223 = vmatprep.subr.mxu0 0.0
    %224 = vmatpush1.msra.mxu0 %v193
    %225 = vmatprep.subr.mxu0 0.0
    %226 = vmatpush1.msra.mxu0 %v44
    %227 = vmatprep.subr.mxu0 0.0
    %228 = vmatpush2.msra.mxu0 0.0
    %229 = vmatprep.subr.mxu0 0.0
    %230 = vmatpush2.msra.mxu0 0.0
    %231 = vmatprep.subr.mxu0 0.0
    %232 = vmatpush2.msra.mxu0 0.0
    %233 = vmatprep.subr.mxu0 0.0
    %234 = vmatpush2.msra.mxu0 0.0
    %235 = vmatprep.subr.mxu0 0.0
    %236 = vmatpush2.msra.mxu0 0.0
    %237 = vmatprep.subr.mxu0 0.0
    %238 = vmatpush2.msra.mxu0 0.0
    %239 = vmatprep.subr.mxu0 0.0
    %240 = vmatpush2.msra.mxu0 0.0
    %241 = vmatprep.subr.mxu0 0.0
    %242 = vmatpush2.msra.mxu0 0.0
    %243 = vmatprep.subr.mxu0 0.0
    %244 = vmatpush2.msra.mxu0 0.0
    %245 = vmatprep.subr.mxu0 0.0
    %246 = vmatpush2.msra.mxu0 0.0
    %247 = vmatprep.subr.mxu0 0.0
    %248 = vmatpush2.msra.mxu0 0.0
    %249 = vmatprep.subr.mxu0 0.0
    %250 = vmatpush2.msra.mxu0 0.0
    %251 = vmatprep.subr.mxu0 0.0
    %252 = vmatpush2.msra.mxu0 0.0
    %253 = vmatprep.subr.mxu0 0.0
    %254 = vmatpush2.msra.mxu0 0.0
    %255 = vmatprep.subr.mxu0 0.0
    %256 = vmatpush2.msra.mxu0 0.0
    %257 = vmatprep.subr.mxu0 0.0
    %258 = vmatpush2.msra.mxu0 0.0
    %259 = vmatprep.mubr.f32.mxu0 0.0
    %260 = vmatmul.mubr.f32.gmra.mxu0 %v144
    %v261 = vpop.f32.mrf.mxu0
    %v262 = vadd.f32 %v65, %v261
    %v263 = vpop.f32.mrf.mxu0
    %264 = vmatprep.mubr.f32.mxu0 0.0
    %265 = vmatmul.mubr.f32.gmra.mxu0 %v147
    %v266 = vpop.f32.mrf.mxu0
    %v267 = vadd.f32 %v70, %v266
    %v268 = vpop.f32.mrf.mxu0
    %269 = vmatprep.mubr.f32.mxu0 0.0
    %270 = vmatmul.mubr.f32.gmra.mxu0 %v150
    %v271 = vpop.f32.mrf.mxu0
    %v272 = vadd.f32 %v75, %v271
    %v273 = vpop.f32.mrf.mxu0
    %274 = vmatprep.mubr.f32.mxu0 0.0
    %275 = vmatmul.mubr.f32.gmra.mxu0 %v153
    %v276 = vpop.f32.mrf.mxu0
    %v277 = vadd.f32 %v80, %v276
    %v278 = vpop.f32.mrf.mxu0
    %279 = vmatprep.mubr.f32.mxu0 0.0
    %280 = vmatmul.mubr.f32.gmra.mxu0 %v156
    %v281 = vpop.f32.mrf.mxu0
    %v282 = vadd.f32 %v85, %v281
    %v283 = vpop.f32.mrf.mxu0
    %284 = vmatprep.mubr.f32.mxu0 0.0
    %285 = vmatmul.mubr.f32.gmra.mxu0 %v159
    %v286 = vpop.f32.mrf.mxu0
    %v287 = vadd.f32 %v90, %v286
    %v288 = vpop.f32.mrf.mxu0
    %289 = vmatprep.mubr.f32.mxu0 0.0
    %290 = vmatmul.mubr.f32.gmra.mxu0 %v162
    %v291 = vpop.f32.mrf.mxu0
    %v292 = vadd.f32 %v95, %v291
    %v293 = vpop.f32.mrf.mxu0
    %294 = vmatprep.mubr.f32.mxu0 0.0
    %295 = vmatmul.mubr.f32.gmra.mxu0 %v165
    %v296 = vpop.f32.mrf.mxu0
    %v297 = vadd.f32 %v100, %v296
    %v298 = vpop.f32.mrf.mxu0
    %299 = vmatprep.mubr.f32.mxu0 0.0
    %300 = vmatmul.mubr.f32.gmra.mxu0 %v168
    %v301 = vpop.f32.mrf.mxu0
    %v302 = vadd.f32 %v105, %v301
    %v303 = vpop.f32.mrf.mxu0
    %304 = vmatprep.mubr.f32.mxu0 0.0
    %305 = vmatmul.mubr.f32.gmra.mxu0 %v171
    %v306 = vpop.f32.mrf.mxu0
    %v307 = vadd.f32 %v110, %v306
    %v308 = vpop.f32.mrf.mxu0
    %309 = vmatprep.mubr.f32.mxu0 0.0
    %310 = vmatmul.mubr.f32.gmra.mxu0 %v174
    %v311 = vpop.f32.mrf.mxu0
    %v312 = vadd.f32 %v115, %v311
    %v313 = vpop.f32.mrf.mxu0
    %314 = vmatprep.mubr.f32.mxu0 0.0
    %315 = vmatmul.mubr.f32.gmra.mxu0 %v177
    %v316 = vpop.f32.mrf.mxu0
    %v317 = vadd.f32 %v120, %v316
    %v318 = vpop.f32.mrf.mxu0
    %319 = vmatprep.mubr.f32.mxu0 0.0
    %320 = vmatmul.mubr.f32.gmra.mxu0 %v180
    %v321 = vpop.f32.mrf.mxu0
    %v322 = vadd.f32 %v125, %v321
    %v323 = vpop.f32.mrf.mxu0
    %324 = vmatprep.mubr.f32.mxu0 0.0
    %325 = vmatmul.mubr.f32.gmra.mxu0 %v183
    %v326 = vpop.f32.mrf.mxu0
    %v327 = vadd.f32 %v130, %v326
    %v328 = vpop.f32.mrf.mxu0
    %329 = vmatprep.mubr.f32.mxu0 0.0
    %330 = vmatmul.mubr.f32.gmra.mxu0 %v186
    %v331 = vpop.f32.mrf.mxu0
    %v332 = vadd.f32 %v135, %v331
    %v333 = vpop.f32.mrf.mxu0
    %334 = vmatprep.mubr.f32.mxu0 0.0
    %335 = vmatmul.mubr.f32.gmra.mxu0 %v189
    %v336 = vpop.f32.mrf.mxu0
    %v337 = vadd.f32 %v140, %v336
    %v338 = vpop.f32.mrf.mxu0
    %339 = vdwg.mxu0
    %v340 = vmax.f32 %v262, 0.0
    %v341 = vmax.f32 %v267, 0.0
    %v342 = vmax.f32 %v272, 0.0
    %v343 = vmax.f32 %v277, 0.0
    %v344 = vmax.f32 %v282, 0.0
    %v345 = vmax.f32 %v287, 0.0
    %v346 = vmax.f32 %v292, 0.0
    %v347 = vmax.f32 %v297, 0.0
    %v348 = vmax.f32 %v302, 0.0
    %v349 = vmax.f32 %v307, 0.0
    %v350 = vmax.f32 %v312, 0.0
    %v351 = vmax.f32 %v317, 0.0
    %v352 = vmax.f32 %v322, 0.0
    %v353 = vmax.f32 %v327, 0.0
    %v354 = vmax.f32 %v332, 0.0
    %v355 = vmax.f32 %v337, 0.0
    %v356 = vld [vmem:[%s3] sm:$0xff]
    %v357 = vld [vmem:[%s3 + $0x8] sm:$0xff]
    %v358 = vld [vmem:[%s3 + $0x10] sm:$0xff]
    %v359 = vld [vmem:[%s3 + $0x18] sm:$0xff]
    %v360 = vld [vmem:[%s3 + $0x20] sm:$0xff]
    %v361 = vld [vmem:[%s3 + $0x28] sm:$0xff]
    %v362 = vld [vmem:[%s3 + $0x30] sm:$0xff]
    %v363 = vld [vmem:[%s3 + $0x38] sm:$0xff]
    %v364 = vld [vmem:[%s3 + $0x40] sm:$0xff]
    %v365 = vld [vmem:[%s3 + $0x48] sm:$0xff]
    %v366 = vld [vmem:[%s3 + $0x50] sm:$0xff]
    %v367 = vld [vmem:[%s3 + $0x58] sm:$0xff]
    %v368 = vld [vmem:[%s3 + $0x60] sm:$0xff]
    %v369 = vld [vmem:[%s3 + $0x68] sm:$0xff]
    %v370 = vld [vmem:[%s3 + $0x70] sm:$0xff]
    %v371 = vld [vmem:[%s3 + $0x78] sm:$0xff]
    %v372 = vld [vmem:[%s4] sm:$0xff]
    %v373 = vld [vmem:[%s4 + $0x8] sm:$0xff]
    %v374 = vld [vmem:[%s4 + $0x10] sm:$0xff]
    %v375 = vld [vmem:[%s4 + $0x18] sm:$0xff]
    %v376 = vld [vmem:[%s4 + $0x20] sm:$0xff]
    %v377 = vld [vmem:[%s4 + $0x28] sm:$0xff]
    %v378 = vld [vmem:[%s4 + $0x30] sm:$0xff]
    %v379 = vld [vmem:[%s4 + $0x38] sm:$0xff]
    %v380 = vld [vmem:[%s4 + $0x40] sm:$0xff]
    %v381 = vld [vmem:[%s4 + $0x48] sm:$0xff]
    %v382 = vld [vmem:[%s4 + $0x50] sm:$0xff]
    %v383 = vld [vmem:[%s4 + $0x58] sm:$0xff]
    %v384 = vld [vmem:[%s4 + $0x60] sm:$0xff]
    %v385 = vld [vmem:[%s4 + $0x68] sm:$0xff]
    %v386 = vld [vmem:[%s4 + $0x70] sm:$0xff]
    %v387 = vld [vmem:[%s4 + $0x78] sm:$0xff]
    %389 = vset.pattern.permute.xlu0 0
    %390 = vperm.xlu0 %389, %v372
    %v391 = vpop.permute.xlu0 %390
    %394 = vset.pattern.permute.xlu0 0
    %395 = vperm.xlu0 %394, %v373
    %v396 = vpop.permute.xlu0 %395
    %399 = vset.pattern.permute.xlu0 0
    %400 = vperm.xlu0 %399, %v374
    %v401 = vpop.permute.xlu0 %400
    %404 = vset.pattern.permute.xlu0 0
    %405 = vperm.xlu0 %404, %v375
    %v406 = vpop.permute.xlu0 %405
    %409 = vset.pattern.permute.xlu0 0
    %410 = vperm.xlu0 %409, %v376
    %v411 = vpop.permute.xlu0 %410
    %414 = vset.pattern.permute.xlu0 0
    %415 = vperm.xlu0 %414, %v377
    %v416 = vpop.permute.xlu0 %415
    %419 = vset.pattern.permute.xlu0 0
    %420 = vperm.xlu0 %419, %v378
    %v421 = vpop.permute.xlu0 %420
    %424 = vset.pattern.permute.xlu0 0
    %425 = vperm.xlu0 %424, %v379
    %v426 = vpop.permute.xlu0 %425
    %429 = vset.pattern.permute.xlu0 0
    %430 = vperm.xlu0 %429, %v380
    %v431 = vpop.permute.xlu0 %430
    %434 = vset.pattern.permute.xlu0 0
    %435 = vperm.xlu0 %434, %v381
    %v436 = vpop.permute.xlu0 %435
    %439 = vset.pattern.permute.xlu0 0
    %440 = vperm.xlu0 %439, %v382
    %v441 = vpop.permute.xlu0 %440
    %444 = vset.pattern.permute.xlu0 0
    %445 = vperm.xlu0 %444, %v383
    %v446 = vpop.permute.xlu0 %445
    %449 = vset.pattern.permute.xlu0 0
    %450 = vperm.xlu0 %449, %v384
    %v451 = vpop.permute.xlu0 %450
    %454 = vset.pattern.permute.xlu0 0
    %455 = vperm.xlu0 %454, %v385
    %v456 = vpop.permute.xlu0 %455
    %459 = vset.pattern.permute.xlu0 0
    %460 = vperm.xlu0 %459, %v386
    %v461 = vpop.permute.xlu0 %460
    %464 = vset.pattern.permute.xlu0 0
    %465 = vperm.xlu0 %464, %v387
    %v466 = vpop.permute.xlu0 %465
    %468 = vmatprep.subr.mxu0 0.0
    %469 = vmatpush1.msra.mxu0 %v355
    %470 = vmatprep.subr.mxu0 0.0
    %471 = vmatpush1.msra.mxu0 %v354
    %472 = vmatprep.subr.mxu0 0.0
    %473 = vmatpush1.msra.mxu0 %v353
    %474 = vmatprep.subr.mxu0 0.0
    %475 = vmatpush1.msra.mxu0 %v352
    %476 = vmatprep.subr.mxu0 0.0
    %477 = vmatpush1.msra.mxu0 %v351
    %478 = vmatprep.subr.mxu0 0.0
    %479 = vmatpush1.msra.mxu0 %v350
    %480 = vmatprep.subr.mxu0 0.0
    %481 = vmatpush1.msra.mxu0 %v349
    %482 = vmatprep.subr.mxu0 0.0
    %483 = vmatpush1.msra.mxu0 %v348
    %484 = vmatprep.subr.mxu0 0.0
    %485 = vmatpush1.msra.mxu0 %v347
    %486 = vmatprep.subr.mxu0 0.0
    %487 = vmatpush1.msra.mxu0 %v346
    %488 = vmatprep.subr.mxu0 0.0
    %489 = vmatpush1.msra.mxu0 %v345
    %490 = vmatprep.subr.mxu0 0.0
    %491 = vmatpush1.msra.mxu0 %v344
    %492 = vmatprep.subr.mxu0 0.0
    %493 = vmatpush1.msra.mxu0 %v343
    %494 = vmatprep.subr.mxu0 0.0
    %495 = vmatpush1.msra.mxu0 %v342
    %496 = vmatprep.subr.mxu0 0.0
    %497 = vmatpush1.msra.mxu0 %v341
    %498 = vmatprep.subr.mxu0 0.0
    %499 = vmatpush1.msra.mxu0 %v340
    %500 = vmatprep.subr.mxu0 0.0
    %501 = vmatpush2.msra.mxu0 0.0
    %502 = vmatprep.subr.mxu0 0.0
    %503 = vmatpush2.msra.mxu0 0.0
    %504 = vmatprep.subr.mxu0 0.0
    %505 = vmatpush2.msra.mxu0 0.0
    %506 = vmatprep.subr.mxu0 0.0
    %507 = vmatpush2.msra.mxu0 0.0
    %508 = vmatprep.subr.mxu0 0.0
    %509 = vmatpush2.msra.mxu0 0.0
    %510 = vmatprep.subr.mxu0 0.0
    %511 = vmatpush2.msra.mxu0 0.0
    %512 = vmatprep.subr.mxu0 0.0
    %513 = vmatpush2.msra.mxu0 0.0
    %514 = vmatprep.subr.mxu0 0.0
    %515 = vmatpush2.msra.mxu0 0.0
    %516 = vmatprep.subr.mxu0 0.0
    %517 = vmatpush2.msra.mxu0 0.0
    %518 = vmatprep.subr.mxu0 0.0
    %519 = vmatpush2.msra.mxu0 0.0
    %520 = vmatprep.subr.mxu0 0.0
    %521 = vmatpush2.msra.mxu0 0.0
    %522 = vmatprep.subr.mxu0 0.0
    %523 = vmatpush2.msra.mxu0 0.0
    %524 = vmatprep.subr.mxu0 0.0
    %525 = vmatpush2.msra.mxu0 0.0
    %526 = vmatprep.subr.mxu0 0.0
    %527 = vmatpush2.msra.mxu0 0.0
    %528 = vmatprep.subr.mxu0 0.0
    %529 = vmatpush2.msra.mxu0 0.0
    %530 = vmatprep.subr.mxu0 0.0
    %531 = vmatpush2.msra.mxu0 0.0
    %532 = vmatprep.mubr.f32.mxu0 0.0
    %533 = vmatmul.mubr.f32.gmra.mxu0 %v356
    %v534 = vpop.f32.mrf.mxu0
    %v535 = vadd.f32 %v391, %v534
    %v536 = vpop.f32.mrf.mxu0
    %537 = vmatprep.mubr.f32.mxu0 0.0
    %538 = vmatmul.mubr.f32.gmra.mxu0 %v357
    %v539 = vpop.f32.mrf.mxu0
    %v540 = vadd.f32 %v396, %v539
    %v541 = vpop.f32.mrf.mxu0
    %542 = vmatprep.mubr.f32.mxu0 0.0
    %543 = vmatmul.mubr.f32.gmra.mxu0 %v358
    %v544 = vpop.f32.mrf.mxu0
    %v545 = vadd.f32 %v401, %v544
    %v546 = vpop.f32.mrf.mxu0
    %547 = vmatprep.mubr.f32.mxu0 0.0
    %548 = vmatmul.mubr.f32.gmra.mxu0 %v359
    %v549 = vpop.f32.mrf.mxu0
    %v550 = vadd.f32 %v406, %v549
    %v551 = vpop.f32.mrf.mxu0
    %552 = vmatprep.mubr.f32.mxu0 0.0
    %553 = vmatmul.mubr.f32.gmra.mxu0 %v360
    %v554 = vpop.f32.mrf.mxu0
    %v555 = vadd.f32 %v411, %v554
    %v556 = vpop.f32.mrf.mxu0
    %557 = vmatprep.mubr.f32.mxu0 0.0
    %558 = vmatmul.mubr.f32.gmra.mxu0 %v361
    %v559 = vpop.f32.mrf.mxu0
    %v560 = vadd.f32 %v416, %v559
    %v561 = vpop.f32.mrf.mxu0
    %562 = vmatprep.mubr.f32.mxu0 0.0
    %563 = vmatmul.mubr.f32.gmra.mxu0 %v362
    %v564 = vpop.f32.mrf.mxu0
    %v565 = vadd.f32 %v421, %v564
    %v566 = vpop.f32.mrf.mxu0
    %567 = vmatprep.mubr.f32.mxu0 0.0
    %568 = vmatmul.mubr.f32.gmra.mxu0 %v363
    %v569 = vpop.f32.mrf.mxu0
    %v570 = vadd.f32 %v426, %v569
    %v571 = vpop.f32.mrf.mxu0
    %572 = vmatprep.mubr.f32.mxu0 0.0
    %573 = vmatmul.mubr.f32.gmra.mxu0 %v364
    %v574 = vpop.f32.mrf.mxu0
    %v575 = vadd.f32 %v431, %v574
    %v576 = vpop.f32.mrf.mxu0
    %577 = vmatprep.mubr.f32.mxu0 0.0
    %578 = vmatmul.mubr.f32.gmra.mxu0 %v365
    %v579 = vpop.f32.mrf.mxu0
    %v580 = vadd.f32 %v436, %v579
    %v581 = vpop.f32.mrf.mxu0
    %582 = vmatprep.mubr.f32.mxu0 0.0
    %583 = vmatmul.mubr.f32.gmra.mxu0 %v366
    %v584 = vpop.f32.mrf.mxu0
    %v585 = vadd.f32 %v441, %v584
    %v586 = vpop.f32.mrf.mxu0
    %587 = vmatprep.mubr.f32.mxu0 0.0
    %588 = vmatmul.mubr.f32.gmra.mxu0 %v367
    %v589 = vpop.f32.mrf.mxu0
    %v590 = vadd.f32 %v446, %v589
    %v591 = vpop.f32.mrf.mxu0
    %592 = vmatprep.mubr.f32.mxu0 0.0
    %593 = vmatmul.mubr.f32.gmra.mxu0 %v368
    %v594 = vpop.f32.mrf.mxu0
    %v595 = vadd.f32 %v451, %v594
    %v596 = vpop.f32.mrf.mxu0
    %597 = vmatprep.mubr.f32.mxu0 0.0
    %598 = vmatmul.mubr.f32.gmra.mxu0 %v369
    %v599 = vpop.f32.mrf.mxu0
    %v600 = vadd.f32 %v456, %v599
    %v601 = vpop.f32.mrf.mxu0
    %602 = vmatprep.mubr.f32.mxu0 0.0
    %603 = vmatmul.mubr.f32.gmra.mxu0 %v370
    %v604 = vpop.f32.mrf.mxu0
    %v605 = vadd.f32 %v461, %v604
    %v606 = vpop.f32.mrf.mxu0
    %607 = vmatprep.mubr.f32.mxu0 0.0
    %608 = vmatmul.mubr.f32.gmra.mxu0 %v371
    %v609 = vpop.f32.mrf.mxu0
    %v610 = vadd.f32 %v466, %v609
    %v611 = vpop.f32.mrf.mxu0
    %612 = vdwg.mxu0
    %v613 = vmax.f32 %v535, 0.0
    %v614 = vmax.f32 %v540, 0.0
    %v615 = vmax.f32 %v545, 0.0
    %v616 = vmax.f32 %v550, 0.0
    %v617 = vmax.f32 %v555, 0.0
    %v618 = vmax.f32 %v560, 0.0
    %v619 = vmax.f32 %v565, 0.0
    %v620 = vmax.f32 %v570, 0.0
    %v621 = vmax.f32 %v575, 0.0
    %v622 = vmax.f32 %v580, 0.0
    %v623 = vmax.f32 %v585, 0.0
    %v624 = vmax.f32 %v590, 0.0
    %v625 = vmax.f32 %v595, 0.0
    %v626 = vmax.f32 %v600, 0.0
    %v627 = vmax.f32 %v605, 0.0
    %v628 = vmax.f32 %v610, 0.0
    %v629 = vld [vmem:[%s5] sm:$0xff]
    %v630 = vld [vmem:[%s5 + $0x8] sm:$0xff]
    %v631 = vld [vmem:[%s5 + $0x10] sm:$0xff]
    %v632 = vld [vmem:[%s5 + $0x18] sm:$0xff]
    %v633 = vld [vmem:[%s5 + $0x20] sm:$0xff]
    %v634 = vld [vmem:[%s5 + $0x28] sm:$0xff]
    %v635 = vld [vmem:[%s5 + $0x30] sm:$0xff]
    %v636 = vld [vmem:[%s5 + $0x38] sm:$0xff]
    %v637 = vld [vmem:[%s5 + $0x40] sm:$0xff]
    %v638 = vld [vmem:[%s5 + $0x48] sm:$0xff]
    %v639 = vld [vmem:[%s5 + $0x50] sm:$0xff]
    %v640 = vld [vmem:[%s5 + $0x58] sm:$0xff]
    %v641 = vld [vmem:[%s5 + $0x60] sm:$0xff]
    %v642 = vld [vmem:[%s5 + $0x68] sm:$0xff]
    %v643 = vld [vmem:[%s5 + $0x70] sm:$0xff]
    %v644 = vld [vmem:[%s5 + $0x78] sm:$0xff]
    %646 = vset.pattern.permute.xlu0 0
    %647 = vperm.xlu0 %646, %v629
    %v648 = vpop.permute.xlu0 %647
    %651 = vset.pattern.permute.xlu0 0
    %652 = vperm.xlu0 %651, %v630
    %v653 = vpop.permute.xlu0 %652
    %656 = vset.pattern.permute.xlu0 0
    %657 = vperm.xlu0 %656, %v631
    %v658 = vpop.permute.xlu0 %657
    %661 = vset.pattern.permute.xlu0 0
    %662 = vperm.xlu0 %661, %v632
    %v663 = vpop.permute.xlu0 %662
    %666 = vset.pattern.permute.xlu0 0
    %667 = vperm.xlu0 %666, %v633
    %v668 = vpop.permute.xlu0 %667
    %671 = vset.pattern.permute.xlu0 0
    %672 = vperm.xlu0 %671, %v634
    %v673 = vpop.permute.xlu0 %672
    %676 = vset.pattern.permute.xlu0 0
    %677 = vperm.xlu0 %676, %v635
    %v678 = vpop.permute.xlu0 %677
    %681 = vset.pattern.permute.xlu0 0
    %682 = vperm.xlu0 %681, %v636
    %v683 = vpop.permute.xlu0 %682
    %686 = vset.pattern.permute.xlu0 0
    %687 = vperm.xlu0 %686, %v637
    %v688 = vpop.permute.xlu0 %687
    %691 = vset.pattern.permute.xlu0 0
    %692 = vperm.xlu0 %691, %v638
    %v693 = vpop.permute.xlu0 %692
    %696 = vset.pattern.permute.xlu0 0
    %697 = vperm.xlu0 %696, %v639
    %v698 = vpop.permute.xlu0 %697
    %701 = vset.pattern.permute.xlu0 0
    %702 = vperm.xlu0 %701, %v640
    %v703 = vpop.permute.xlu0 %702
    %706 = vset.pattern.permute.xlu0 0
    %707 = vperm.xlu0 %706, %v641
    %v708 = vpop.permute.xlu0 %707
    %711 = vset.pattern.permute.xlu0 0
    %712 = vperm.xlu0 %711, %v642
    %v713 = vpop.permute.xlu0 %712
    %716 = vset.pattern.permute.xlu0 0
    %717 = vperm.xlu0 %716, %v643
    %v718 = vpop.permute.xlu0 %717
    %721 = vset.pattern.permute.xlu0 0
    %722 = vperm.xlu0 %721, %v644
    %v723 = vpop.permute.xlu0 %722
    %v725 = vmul.f32 %v613, %v648
    %v726 = vmul.f32 %v614, %v653
    %v727 = vmul.f32 %v615, %v658
    %v728 = vmul.f32 %v616, %v663
    %v729 = vmul.f32 %v617, %v668
    %v730 = vmul.f32 %v618, %v673
    %v731 = vmul.f32 %v619, %v678
    %v732 = vmul.f32 %v620, %v683
    %v733 = vmul.f32 %v621, %v688
    %v734 = vmul.f32 %v622, %v693
    %v735 = vmul.f32 %v623, %v698
    %v736 = vmul.f32 %v624, %v703
    %v737 = vmul.f32 %v625, %v708
    %v738 = vmul.f32 %v626, %v713
    %v739 = vmul.f32 %v627, %v718
    %v740 = vmul.f32 %v628, %v723
    %v741 = vadd.f32 %v725, %v726
    %v742 = vadd.f32 %v741, %v727
    %v743 = vadd.f32 %v742, %v728
    %v744 = vadd.f32 %v743, %v729
    %v745 = vadd.f32 %v744, %v730
    %v746 = vadd.f32 %v745, %v731
    %v747 = vadd.f32 %v746, %v732
    %v748 = vadd.f32 %v747, %v733
    %v749 = vadd.f32 %v748, %v734
    %v750 = vadd.f32 %v749, %v735
    %v751 = vadd.f32 %v750, %v736
    %v752 = vadd.f32 %v751, %v737
    %v753 = vadd.f32 %v752, %v738
    %v754 = vadd.f32 %v753, %v739
    %v755 = vadd.f32 %v754, %v740
    %v756 = vrot.slane %v755, 4
    %v757 = vadd.f32 %v755, %v756
    %v758 = vrot.slane %v757, 2
    %v759 = vadd.f32 %v757, %v758
    %v760 = vrot.slane %v759, 1
    %v761 = vadd.f32 %v759, %v760
    %s762 = sld [smem:[#allocation2]]
    %v763 = vstv %s762
    %v764 = vadd.f32 %v761, %v763
    %765 = vst [vmem:[#allocation3] sm:$0x1] %v764
    // Predicated region
    $region30: #{tpu_custom_call.1} parent=1 // pred_check
      _
    $region31: #{tpu_custom_call.1} parent=1 // pred_check_branch
      %767 = sbr.rel (0) target = $region33
    $region32: #{tpu_custom_call.1} parent=1 // pred_region
      %s769 = ssub.s32 16, 16
      %770 = vsyncadd [#allocation4], %s769
      %s772 = sshll.u32 [#allocation3], 4
      %s773 = int_to_ptr.vmem [resolvable:$true] %s772
      %775 = dma.vmem_to_hbm [thread:$0]  %s773, 16, %s7, [#allocation4]
    $region33: #{tpu_custom_call.1} parent=1 // pred_fallthru
      _
    // Predicated region
    $region34: #{tpu_custom_call.1} parent=1 // pred_check
      _
    $region35: #{tpu_custom_call.1} parent=1 // pred_check_branch
      %777 = sbr.rel (0) target = $region37
    $region36: #{tpu_custom_call.1} parent=1 // pred_region
      %778 = dma.done [#allocation4], 16
    $region37: #{tpu_custom_call.1} parent=1 // pred_fallthru
      _
    %779 = vsyncpa [#allocation4], 1

</llo_original>
